<compile_context>
chip_gen: v7x
topology: tpu7x:2x2x1
jax: 0.10.0
libtpu: 0.0.40
codegen_flags: <defaults>
</compile_context>

<pallas_src>
import jax
import jax.numpy as jnp
from jax.experimental import pallas as pl
from jax.experimental.pallas import tpu as pltpu

D_MODEL = 3
NUM_HEADS = 1
SEQ_LEN = 6


def self_attention_kernel(x_ref, wb_ref, o_ref):
    """One batch tile of self-attention.

    x_ref : [D, S, TB] VMEM  -- feature-major activations, batch along lanes.
    wb_ref: [D+1, 3D]  SMEM  -- rows 0..D-1: fused (pre-transposed) QKV weight
                                with 1/sqrt(d_k) folded into the Q columns;
                                row D: fused bias (Q part pre-scaled).
    o_ref : [D, S, TB] VMEM  -- attention output in the same layout.
    """
    d_model, seq, _ = x_ref.shape

    # D feature planes of shape [S, TB]; plane d is one (sublane, lane) tile.
    x = [x_ref[d] for d in range(d_model)]

    def project(col0):
        # Linear layer as scalar-broadcast FMAs on the VPU. The contraction
        # dim (3) is far below an MXU tile, so the MXU would only add latency.
        return [
            sum(x[d] * wb_ref[d, col0 + e] for d in range(d_model))
            + wb_ref[d_model, col0 + e]
            for e in range(d_model)
        ]

    q = project(0)              # 1/sqrt(d_k) already folded into weights/bias
    k = project(d_model)
    v = project(2 * d_model)

    out_rows = [[] for _ in range(d_model)]
    for i in range(seq):        # static unroll over the (tiny) query positions
        # scores of query i against every key, per batch lane: [S, TB]
        s = sum(q[e][i:i + 1, :] * k[e] for e in range(d_model))
        # numerically stable softmax over the key (sublane) axis; EXACT divide
        m = jnp.max(s, axis=0, keepdims=True)
        p = jnp.exp(s - m)
        a = p / jnp.sum(p, axis=0, keepdims=True)
        for d in range(d_model):
            out_rows[d].append(jnp.sum(a * v[d], axis=0, keepdims=True))

    for d in range(d_model):
        # [S, TB] store per feature plane: 128-lane-dense (unmasked lanes)
        o_ref[d] = jnp.concatenate(out_rows[d], axis=0)


def prepare_params(wq, bq, wk, bk, wv, bv):
    """One-time parameter prep, hoisted out of the per-call hot path.

    PyTorch Linear weights arrive as [out, in]; we transpose to [in, out],
    fold the attention scale into Q, fuse Q/K/V side by side, and pack the
    fused bias as the last row so the kernel takes a single SMEM operand.
    """
    d_k = wq.shape[0] // NUM_HEADS
    scale = 1.0 / jnp.sqrt(jnp.float32(d_k))
    w_qkv = jnp.concatenate([wq.T * scale, wk.T, wv.T], axis=1)       # [D, 3D]
    b_qkv = jnp.concatenate([bq * scale, bk, bv])[None, :]            # [1, 3D]
    return jnp.concatenate([w_qkv, b_qkv], axis=0)                    # [D+1, 3D]


def self_attention_batched(x, wb, *, tile_b=128):
    """Batched forward: x [B, S, D] -> [B, S, D]; wb from prepare_params()."""
    B, S, D = x.shape
    tb = min(tile_b, B)
    Bp = ((B + tb - 1) // tb) * tb

    # Layout plumbing (amortized over the batch): batch goes on the lane axis
    # so every vreg and the output store inside the kernel are lane-dense.
    x_dsb = jnp.transpose(x, (2, 1, 0))                               # [D, S, B]
    if Bp != B:
        x_dsb = jnp.pad(x_dsb, ((0, 0), (0, 0), (0, Bp - B)))

    out = pl.pallas_call(
        self_attention_kernel,
        out_shape=jax.ShapeDtypeStruct((D, S, Bp), jnp.float32),
        grid=(Bp // tb,),
        in_specs=[
            pl.BlockSpec((D, S, tb), lambda b: (0, 0, b)),
            pl.BlockSpec(memory_space=pltpu.MemorySpace.SMEM),
        ],
        out_specs=pl.BlockSpec((D, S, tb), lambda b: (0, 0, b)),
        compiler_params=pltpu.CompilerParams(
            dimension_semantics=("parallel",)),  # shards batch across TCs (v7x)
    )(x_dsb, wb)

    return jnp.transpose(out[:, :, :B], (2, 1, 0))                    # [B, S, D]


def self_attention(x, wb):
    """Module-equivalent forward: x [S, D] -> [S, D]."""
    return self_attention_batched(x[None], wb, tile_b=1)[0]


def _reference(x, wq, bq, wk, bk, wv, bv):
    q = x @ wq.T + bq
    k = x @ wk.T + bk
    v = x @ wv.T + bv
    qk = (q @ k.T) / jnp.sqrt(jnp.float32(D_MODEL // NUM_HEADS))
    return jax.nn.softmax(qk, axis=-1) @ v


if __name__ == "__main__":
    key = jax.random.PRNGKey(0)
    kx, kq, kbq, kk, kbk, kv, kbv, kxb = jax.random.split(key, 8)

    # deterministic synthetic parameters (PyTorch Linear shapes: [out, in], [out])
    x = jax.random.normal(kx, (SEQ_LEN, D_MODEL), dtype=jnp.float32)
    wq = jax.random.normal(kq, (D_MODEL, D_MODEL), dtype=jnp.float32) * 0.5
    bq = jax.random.normal(kbq, (D_MODEL,), dtype=jnp.float32) * 0.1
    wk = jax.random.normal(kk, (D_MODEL, D_MODEL), dtype=jnp.float32) * 0.5
    bk = jax.random.normal(kbk, (D_MODEL,), dtype=jnp.float32) * 0.1
    wv = jax.random.normal(kv, (D_MODEL, D_MODEL), dtype=jnp.float32) * 0.5
    bv = jax.random.normal(kbv, (D_MODEL,), dtype=jnp.float32) * 0.1

    wb = prepare_params(wq, bq, wk, bk, wv, bv)   # one-time parameter prep

    # 1) module-equivalent single-sequence forward ([6, 3] -> [6, 3])
    out = jax.block_until_ready(self_attention(x, wb))
    ref = _reference(x, wq, bq, wk, bk, wv, bv)
    assert out.shape == (SEQ_LEN, D_MODEL)
    assert jnp.allclose(out, ref, atol=2e-5, rtol=2e-5), (
        f"single-seq max abs err {jnp.max(jnp.abs(out - ref))}")

    # 2) batched throughput path: many sequences per pallas_call, batch on the
    #    lane axis, batch grid axis marked "parallel".
    B = 256
    xb = jax.random.normal(kxb, (B, SEQ_LEN, D_MODEL), dtype=jnp.float32)
    outb = jax.block_until_ready(self_attention_batched(xb, wb, tile_b=128))
    refb = jax.vmap(lambda xi: _reference(xi, wq, bq, wk, bk, wv, bv))(xb)
    assert outb.shape == (B, SEQ_LEN, D_MODEL)
    assert jnp.allclose(outb, refb, atol=2e-5, rtol=2e-5), (
        f"batched max abs err {jnp.max(jnp.abs(outb - refb))}")

    print("KERNEL_OK")
</pallas_src>

<mosaic_0001>
module attributes {stable_mosaic.version = 11 : i64} {
  func.func @self_attention_kernel(%arg0: i32, %arg1: memref<3x6x1xf32, #tpu.memory_space<vmem>>, %arg2: memref<4x9xf32, #tpu.memory_space<smem>>, %arg3: memref<3x6x1xf32, #tpu.memory_space<vmem>>) attributes {dimension_semantics = [#tpu.dimension_semantics<parallel>], iteration_bounds = array<i64: 1>, scalar_prefetch = 0 : i64, scratch_operands = 0 : i64, tpu.core_type = #tpu.core_type<tc>, window_params = [{transform_indices = @transform_0, window_bounds = array<i64: 3, 6, 1>}, {transform_indices = @transform_1, window_bounds = array<i64: 4, 9>}, {transform_indices = @transform_2, window_bounds = array<i64: 3, 6, 1>}]} {
    %c0 = arith.constant 0 : index
    %c0_0 = arith.constant 0 : index
    %c0_1 = arith.constant 0 : index
    %0 = vector.load %arg1[%c0, %c0_0, %c0_1] : memref<3x6x1xf32, #tpu.memory_space<vmem>>, vector<1x6x1xf32>
    %1 = vector.shape_cast %0 : vector<1x6x1xf32> to vector<6x1xf32>
    %c1 = arith.constant 1 : index
    %c0_2 = arith.constant 0 : index
    %c0_3 = arith.constant 0 : index
    %2 = vector.load %arg1[%c1, %c0_2, %c0_3] : memref<3x6x1xf32, #tpu.memory_space<vmem>>, vector<1x6x1xf32>
    %3 = vector.shape_cast %2 : vector<1x6x1xf32> to vector<6x1xf32>
    %c2 = arith.constant 2 : index
    %c0_4 = arith.constant 0 : index
    %c0_5 = arith.constant 0 : index
    %4 = vector.load %arg1[%c2, %c0_4, %c0_5] : memref<3x6x1xf32, #tpu.memory_space<vmem>>, vector<1x6x1xf32>
    %5 = vector.shape_cast %4 : vector<1x6x1xf32> to vector<6x1xf32>
    %c0_6 = arith.constant 0 : index
    %c0_7 = arith.constant 0 : index
    %6 = memref.load %arg2[%c0_6, %c0_7] : memref<4x9xf32, #tpu.memory_space<smem>>
    %7 = vector.broadcast %6 : f32 to vector<6x1xf32>
    %8 = arith.mulf %1, %7 : vector<6x1xf32>
    %cst = arith.constant 0.000000e+00 : f32
    %9 = vector.broadcast %cst : f32 to vector<6x1xf32>
    %10 = arith.addf %9, %8 : vector<6x1xf32>
    %c1_8 = arith.constant 1 : index
    %c0_9 = arith.constant 0 : index
    %11 = memref.load %arg2[%c1_8, %c0_9] : memref<4x9xf32, #tpu.memory_space<smem>>
    %12 = vector.broadcast %11 : f32 to vector<6x1xf32>
    %13 = arith.mulf %3, %12 : vector<6x1xf32>
    %14 = arith.addf %10, %13 : vector<6x1xf32>
    %c2_10 = arith.constant 2 : index
    %c0_11 = arith.constant 0 : index
    %15 = memref.load %arg2[%c2_10, %c0_11] : memref<4x9xf32, #tpu.memory_space<smem>>
    %16 = vector.broadcast %15 : f32 to vector<6x1xf32>
    %17 = arith.mulf %5, %16 : vector<6x1xf32>
    %18 = arith.addf %14, %17 : vector<6x1xf32>
    %c3 = arith.constant 3 : index
    %c0_12 = arith.constant 0 : index
    %19 = memref.load %arg2[%c3, %c0_12] : memref<4x9xf32, #tpu.memory_space<smem>>
    %20 = vector.broadcast %19 : f32 to vector<6x1xf32>
    %21 = arith.addf %18, %20 : vector<6x1xf32>
    %c0_13 = arith.constant 0 : index
    %c1_14 = arith.constant 1 : index
    %22 = memref.load %arg2[%c0_13, %c1_14] : memref<4x9xf32, #tpu.memory_space<smem>>
    %23 = vector.broadcast %22 : f32 to vector<6x1xf32>
    %24 = arith.mulf %1, %23 : vector<6x1xf32>
    %cst_15 = arith.constant 0.000000e+00 : f32
    %25 = vector.broadcast %cst_15 : f32 to vector<6x1xf32>
    %26 = arith.addf %25, %24 : vector<6x1xf32>
    %c1_16 = arith.constant 1 : index
    %c1_17 = arith.constant 1 : index
    %27 = memref.load %arg2[%c1_16, %c1_17] : memref<4x9xf32, #tpu.memory_space<smem>>
    %28 = vector.broadcast %27 : f32 to vector<6x1xf32>
    %29 = arith.mulf %3, %28 : vector<6x1xf32>
    %30 = arith.addf %26, %29 : vector<6x1xf32>
    %c2_18 = arith.constant 2 : index
    %c1_19 = arith.constant 1 : index
    %31 = memref.load %arg2[%c2_18, %c1_19] : memref<4x9xf32, #tpu.memory_space<smem>>
    %32 = vector.broadcast %31 : f32 to vector<6x1xf32>
    %33 = arith.mulf %5, %32 : vector<6x1xf32>
    %34 = arith.addf %30, %33 : vector<6x1xf32>
    %c3_20 = arith.constant 3 : index
    %c1_21 = arith.constant 1 : index
    %35 = memref.load %arg2[%c3_20, %c1_21] : memref<4x9xf32, #tpu.memory_space<smem>>
    %36 = vector.broadcast %35 : f32 to vector<6x1xf32>
    %37 = arith.addf %34, %36 : vector<6x1xf32>
    %c0_22 = arith.constant 0 : index
    %c2_23 = arith.constant 2 : index
    %38 = memref.load %arg2[%c0_22, %c2_23] : memref<4x9xf32, #tpu.memory_space<smem>>
    %39 = vector.broadcast %38 : f32 to vector<6x1xf32>
    %40 = arith.mulf %1, %39 : vector<6x1xf32>
    %cst_24 = arith.constant 0.000000e+00 : f32
    %41 = vector.broadcast %cst_24 : f32 to vector<6x1xf32>
    %42 = arith.addf %41, %40 : vector<6x1xf32>
    %c1_25 = arith.constant 1 : index
    %c2_26 = arith.constant 2 : index
    %43 = memref.load %arg2[%c1_25, %c2_26] : memref<4x9xf32, #tpu.memory_space<smem>>
    %44 = vector.broadcast %43 : f32 to vector<6x1xf32>
    %45 = arith.mulf %3, %44 : vector<6x1xf32>
    %46 = arith.addf %42, %45 : vector<6x1xf32>
    %c2_27 = arith.constant 2 : index
    %c2_28 = arith.constant 2 : index
    %47 = memref.load %arg2[%c2_27, %c2_28] : memref<4x9xf32, #tpu.memory_space<smem>>
    %48 = vector.broadcast %47 : f32 to vector<6x1xf32>
    %49 = arith.mulf %5, %48 : vector<6x1xf32>
    %50 = arith.addf %46, %49 : vector<6x1xf32>
    %c3_29 = arith.constant 3 : index
    %c2_30 = arith.constant 2 : index
    %51 = memref.load %arg2[%c3_29, %c2_30] : memref<4x9xf32, #tpu.memory_space<smem>>
    %52 = vector.broadcast %51 : f32 to vector<6x1xf32>
    %53 = arith.addf %50, %52 : vector<6x1xf32>
    %c0_31 = arith.constant 0 : index
    %c3_32 = arith.constant 3 : index
    %54 = memref.load %arg2[%c0_31, %c3_32] : memref<4x9xf32, #tpu.memory_space<smem>>
    %55 = vector.broadcast %54 : f32 to vector<6x1xf32>
    %56 = arith.mulf %1, %55 : vector<6x1xf32>
    %cst_33 = arith.constant 0.000000e+00 : f32
    %57 = vector.broadcast %cst_33 : f32 to vector<6x1xf32>
    %58 = arith.addf %57, %56 : vector<6x1xf32>
    %c1_34 = arith.constant 1 : index
    %c3_35 = arith.constant 3 : index
    %59 = memref.load %arg2[%c1_34, %c3_35] : memref<4x9xf32, #tpu.memory_space<smem>>
    %60 = vector.broadcast %59 : f32 to vector<6x1xf32>
    %61 = arith.mulf %3, %60 : vector<6x1xf32>
    %62 = arith.addf %58, %61 : vector<6x1xf32>
    %c2_36 = arith.constant 2 : index
    %c3_37 = arith.constant 3 : index
    %63 = memref.load %arg2[%c2_36, %c3_37] : memref<4x9xf32, #tpu.memory_space<smem>>
    %64 = vector.broadcast %63 : f32 to vector<6x1xf32>
    %65 = arith.mulf %5, %64 : vector<6x1xf32>
    %66 = arith.addf %62, %65 : vector<6x1xf32>
    %c3_38 = arith.constant 3 : index
    %c3_39 = arith.constant 3 : index
    %67 = memref.load %arg2[%c3_38, %c3_39] : memref<4x9xf32, #tpu.memory_space<smem>>
    %68 = vector.broadcast %67 : f32 to vector<6x1xf32>
    %69 = arith.addf %66, %68 : vector<6x1xf32>
    %c0_40 = arith.constant 0 : index
    %c4 = arith.constant 4 : index
    %70 = memref.load %arg2[%c0_40, %c4] : memref<4x9xf32, #tpu.memory_space<smem>>
    %71 = vector.broadcast %70 : f32 to vector<6x1xf32>
    %72 = arith.mulf %1, %71 : vector<6x1xf32>
    %cst_41 = arith.constant 0.000000e+00 : f32
    %73 = vector.broadcast %cst_41 : f32 to vector<6x1xf32>
    %74 = arith.addf %73, %72 : vector<6x1xf32>
    %c1_42 = arith.constant 1 : index
    %c4_43 = arith.constant 4 : index
    %75 = memref.load %arg2[%c1_42, %c4_43] : memref<4x9xf32, #tpu.memory_space<smem>>
    %76 = vector.broadcast %75 : f32 to vector<6x1xf32>
    %77 = arith.mulf %3, %76 : vector<6x1xf32>
    %78 = arith.addf %74, %77 : vector<6x1xf32>
    %c2_44 = arith.constant 2 : index
    %c4_45 = arith.constant 4 : index
    %79 = memref.load %arg2[%c2_44, %c4_45] : memref<4x9xf32, #tpu.memory_space<smem>>
    %80 = vector.broadcast %79 : f32 to vector<6x1xf32>
    %81 = arith.mulf %5, %80 : vector<6x1xf32>
    %82 = arith.addf %78, %81 : vector<6x1xf32>
    %c3_46 = arith.constant 3 : index
    %c4_47 = arith.constant 4 : index
    %83 = memref.load %arg2[%c3_46, %c4_47] : memref<4x9xf32, #tpu.memory_space<smem>>
    %84 = vector.broadcast %83 : f32 to vector<6x1xf32>
    %85 = arith.addf %82, %84 : vector<6x1xf32>
    %c0_48 = arith.constant 0 : index
    %c5 = arith.constant 5 : index
    %86 = memref.load %arg2[%c0_48, %c5] : memref<4x9xf32, #tpu.memory_space<smem>>
    %87 = vector.broadcast %86 : f32 to vector<6x1xf32>
    %88 = arith.mulf %1, %87 : vector<6x1xf32>
    %cst_49 = arith.constant 0.000000e+00 : f32
    %89 = vector.broadcast %cst_49 : f32 to vector<6x1xf32>
    %90 = arith.addf %89, %88 : vector<6x1xf32>
    %c1_50 = arith.constant 1 : index
    %c5_51 = arith.constant 5 : index
    %91 = memref.load %arg2[%c1_50, %c5_51] : memref<4x9xf32, #tpu.memory_space<smem>>
    %92 = vector.broadcast %91 : f32 to vector<6x1xf32>
    %93 = arith.mulf %3, %92 : vector<6x1xf32>
    %94 = arith.addf %90, %93 : vector<6x1xf32>
    %c2_52 = arith.constant 2 : index
    %c5_53 = arith.constant 5 : index
    %95 = memref.load %arg2[%c2_52, %c5_53] : memref<4x9xf32, #tpu.memory_space<smem>>
    %96 = vector.broadcast %95 : f32 to vector<6x1xf32>
    %97 = arith.mulf %5, %96 : vector<6x1xf32>
    %98 = arith.addf %94, %97 : vector<6x1xf32>
    %c3_54 = arith.constant 3 : index
    %c5_55 = arith.constant 5 : index
    %99 = memref.load %arg2[%c3_54, %c5_55] : memref<4x9xf32, #tpu.memory_space<smem>>
    %100 = vector.broadcast %99 : f32 to vector<6x1xf32>
    %101 = arith.addf %98, %100 : vector<6x1xf32>
    %c0_56 = arith.constant 0 : index
    %c6 = arith.constant 6 : index
    %102 = memref.load %arg2[%c0_56, %c6] : memref<4x9xf32, #tpu.memory_space<smem>>
    %103 = vector.broadcast %102 : f32 to vector<6x1xf32>
    %104 = arith.mulf %1, %103 : vector<6x1xf32>
    %cst_57 = arith.constant 0.000000e+00 : f32
    %105 = vector.broadcast %cst_57 : f32 to vector<6x1xf32>
    %106 = arith.addf %105, %104 : vector<6x1xf32>
    %c1_58 = arith.constant 1 : index
    %c6_59 = arith.constant 6 : index
    %107 = memref.load %arg2[%c1_58, %c6_59] : memref<4x9xf32, #tpu.memory_space<smem>>
    %108 = vector.broadcast %107 : f32 to vector<6x1xf32>
    %109 = arith.mulf %3, %108 : vector<6x1xf32>
    %110 = arith.addf %106, %109 : vector<6x1xf32>
    %c2_60 = arith.constant 2 : index
    %c6_61 = arith.constant 6 : index
    %111 = memref.load %arg2[%c2_60, %c6_61] : memref<4x9xf32, #tpu.memory_space<smem>>
    %112 = vector.broadcast %111 : f32 to vector<6x1xf32>
    %113 = arith.mulf %5, %112 : vector<6x1xf32>
    %114 = arith.addf %110, %113 : vector<6x1xf32>
    %c3_62 = arith.constant 3 : index
    %c6_63 = arith.constant 6 : index
    %115 = memref.load %arg2[%c3_62, %c6_63] : memref<4x9xf32, #tpu.memory_space<smem>>
    %116 = vector.broadcast %115 : f32 to vector<6x1xf32>
    %117 = arith.addf %114, %116 : vector<6x1xf32>
    %c0_64 = arith.constant 0 : index
    %c7 = arith.constant 7 : index
    %118 = memref.load %arg2[%c0_64, %c7] : memref<4x9xf32, #tpu.memory_space<smem>>
    %119 = vector.broadcast %118 : f32 to vector<6x1xf32>
    %120 = arith.mulf %1, %119 : vector<6x1xf32>
    %cst_65 = arith.constant 0.000000e+00 : f32
    %121 = vector.broadcast %cst_65 : f32 to vector<6x1xf32>
    %122 = arith.addf %121, %120 : vector<6x1xf32>
    %c1_66 = arith.constant 1 : index
    %c7_67 = arith.constant 7 : index
    %123 = memref.load %arg2[%c1_66, %c7_67] : memref<4x9xf32, #tpu.memory_space<smem>>
    %124 = vector.broadcast %123 : f32 to vector<6x1xf32>
    %125 = arith.mulf %3, %124 : vector<6x1xf32>
    %126 = arith.addf %122, %125 : vector<6x1xf32>
    %c2_68 = arith.constant 2 : index
    %c7_69 = arith.constant 7 : index
    %127 = memref.load %arg2[%c2_68, %c7_69] : memref<4x9xf32, #tpu.memory_space<smem>>
    %128 = vector.broadcast %127 : f32 to vector<6x1xf32>
    %129 = arith.mulf %5, %128 : vector<6x1xf32>
    %130 = arith.addf %126, %129 : vector<6x1xf32>
    %c3_70 = arith.constant 3 : index
    %c7_71 = arith.constant 7 : index
    %131 = memref.load %arg2[%c3_70, %c7_71] : memref<4x9xf32, #tpu.memory_space<smem>>
    %132 = vector.broadcast %131 : f32 to vector<6x1xf32>
    %133 = arith.addf %130, %132 : vector<6x1xf32>
    %c0_72 = arith.constant 0 : index
    %c8 = arith.constant 8 : index
    %134 = memref.load %arg2[%c0_72, %c8] : memref<4x9xf32, #tpu.memory_space<smem>>
    %135 = vector.broadcast %134 : f32 to vector<6x1xf32>
    %136 = arith.mulf %1, %135 : vector<6x1xf32>
    %cst_73 = arith.constant 0.000000e+00 : f32
    %137 = vector.broadcast %cst_73 : f32 to vector<6x1xf32>
    %138 = arith.addf %137, %136 : vector<6x1xf32>
    %c1_74 = arith.constant 1 : index
    %c8_75 = arith.constant 8 : index
    %139 = memref.load %arg2[%c1_74, %c8_75] : memref<4x9xf32, #tpu.memory_space<smem>>
    %140 = vector.broadcast %139 : f32 to vector<6x1xf32>
    %141 = arith.mulf %3, %140 : vector<6x1xf32>
    %142 = arith.addf %138, %141 : vector<6x1xf32>
    %c2_76 = arith.constant 2 : index
    %c8_77 = arith.constant 8 : index
    %143 = memref.load %arg2[%c2_76, %c8_77] : memref<4x9xf32, #tpu.memory_space<smem>>
    %144 = vector.broadcast %143 : f32 to vector<6x1xf32>
    %145 = arith.mulf %5, %144 : vector<6x1xf32>
    %146 = arith.addf %142, %145 : vector<6x1xf32>
    %c3_78 = arith.constant 3 : index
    %c8_79 = arith.constant 8 : index
    %147 = memref.load %arg2[%c3_78, %c8_79] : memref<4x9xf32, #tpu.memory_space<smem>>
    %148 = vector.broadcast %147 : f32 to vector<6x1xf32>
    %149 = arith.addf %146, %148 : vector<6x1xf32>
    %150 = vector.extract_strided_slice %21 {offsets = [0, 0], sizes = [1, 1], strides = [1, 1]} : vector<6x1xf32> to vector<1x1xf32>
    %151 = vector.broadcast %150 : vector<1x1xf32> to vector<6x1xf32>
    %152 = arith.mulf %151, %69 : vector<6x1xf32>
    %cst_80 = arith.constant 0.000000e+00 : f32
    %153 = vector.broadcast %cst_80 : f32 to vector<6x1xf32>
    %154 = arith.addf %153, %152 : vector<6x1xf32>
    %155 = vector.extract_strided_slice %37 {offsets = [0, 0], sizes = [1, 1], strides = [1, 1]} : vector<6x1xf32> to vector<1x1xf32>
    %156 = vector.broadcast %155 : vector<1x1xf32> to vector<6x1xf32>
    %157 = arith.mulf %156, %85 : vector<6x1xf32>
    %158 = arith.addf %154, %157 : vector<6x1xf32>
    %159 = vector.extract_strided_slice %53 {offsets = [0, 0], sizes = [1, 1], strides = [1, 1]} : vector<6x1xf32> to vector<1x1xf32>
    %160 = vector.broadcast %159 : vector<1x1xf32> to vector<6x1xf32>
    %161 = arith.mulf %160, %101 : vector<6x1xf32>
    %162 = arith.addf %158, %161 : vector<6x1xf32>
    %cst_81 = arith.constant dense<0xFF800000> : vector<1xf32>
    %163 = vector.multi_reduction <maximumf>, %162, %cst_81 [0] : vector<6x1xf32> to vector<1xf32>
    %164 = vector.shape_cast %163 : vector<1xf32> to vector<1x1xf32>
    %165 = vector.broadcast %164 : vector<1x1xf32> to vector<6x1xf32>
    %166 = arith.subf %162, %165 : vector<6x1xf32>
    %167 = math.exp %166 : vector<6x1xf32>
    %cst_82 = arith.constant dense<0.000000e+00> : vector<1xf32>
    %168 = vector.multi_reduction <add>, %167, %cst_82 [0] : vector<6x1xf32> to vector<1xf32>
    %169 = vector.shape_cast %168 : vector<1xf32> to vector<1x1xf32>
    %170 = vector.broadcast %169 : vector<1x1xf32> to vector<6x1xf32>
    %171 = arith.divf %167, %170 : vector<6x1xf32>
    %172 = arith.mulf %171, %117 : vector<6x1xf32>
    %cst_83 = arith.constant dense<0.000000e+00> : vector<1xf32>
    %173 = vector.multi_reduction <add>, %172, %cst_83 [0] : vector<6x1xf32> to vector<1xf32>
    %174 = vector.shape_cast %173 : vector<1xf32> to vector<1x1xf32>
    %175 = arith.mulf %171, %133 : vector<6x1xf32>
    %cst_84 = arith.constant dense<0.000000e+00> : vector<1xf32>
    %176 = vector.multi_reduction <add>, %175, %cst_84 [0] : vector<6x1xf32> to vector<1xf32>
    %177 = vector.shape_cast %176 : vector<1xf32> to vector<1x1xf32>
    %178 = arith.mulf %171, %149 : vector<6x1xf32>
    %cst_85 = arith.constant dense<0.000000e+00> : vector<1xf32>
    %179 = vector.multi_reduction <add>, %178, %cst_85 [0] : vector<6x1xf32> to vector<1xf32>
    %180 = vector.shape_cast %179 : vector<1xf32> to vector<1x1xf32>
    %181 = vector.extract_strided_slice %21 {offsets = [1, 0], sizes = [1, 1], strides = [1, 1]} : vector<6x1xf32> to vector<1x1xf32>
    %182 = vector.broadcast %181 : vector<1x1xf32> to vector<6x1xf32>
    %183 = arith.mulf %182, %69 : vector<6x1xf32>
    %cst_86 = arith.constant 0.000000e+00 : f32
    %184 = vector.broadcast %cst_86 : f32 to vector<6x1xf32>
    %185 = arith.addf %184, %183 : vector<6x1xf32>
    %186 = vector.extract_strided_slice %37 {offsets = [1, 0], sizes = [1, 1], strides = [1, 1]} : vector<6x1xf32> to vector<1x1xf32>
    %187 = vector.broadcast %186 : vector<1x1xf32> to vector<6x1xf32>
    %188 = arith.mulf %187, %85 : vector<6x1xf32>
    %189 = arith.addf %185, %188 : vector<6x1xf32>
    %190 = vector.extract_strided_slice %53 {offsets = [1, 0], sizes = [1, 1], strides = [1, 1]} : vector<6x1xf32> to vector<1x1xf32>
    %191 = vector.broadcast %190 : vector<1x1xf32> to vector<6x1xf32>
    %192 = arith.mulf %191, %101 : vector<6x1xf32>
    %193 = arith.addf %189, %192 : vector<6x1xf32>
    %cst_87 = arith.constant dense<0xFF800000> : vector<1xf32>
    %194 = vector.multi_reduction <maximumf>, %193, %cst_87 [0] : vector<6x1xf32> to vector<1xf32>
    %195 = vector.shape_cast %194 : vector<1xf32> to vector<1x1xf32>
    %196 = vector.broadcast %195 : vector<1x1xf32> to vector<6x1xf32>
    %197 = arith.subf %193, %196 : vector<6x1xf32>
    %198 = math.exp %197 : vector<6x1xf32>
    %cst_88 = arith.constant dense<0.000000e+00> : vector<1xf32>
    %199 = vector.multi_reduction <add>, %198, %cst_88 [0] : vector<6x1xf32> to vector<1xf32>
    %200 = vector.shape_cast %199 : vector<1xf32> to vector<1x1xf32>
    %201 = vector.broadcast %200 : vector<1x1xf32> to vector<6x1xf32>
    %202 = arith.divf %198, %201 : vector<6x1xf32>
    %203 = arith.mulf %202, %117 : vector<6x1xf32>
    %cst_89 = arith.constant dense<0.000000e+00> : vector<1xf32>
    %204 = vector.multi_reduction <add>, %203, %cst_89 [0] : vector<6x1xf32> to vector<1xf32>
    %205 = vector.shape_cast %204 : vector<1xf32> to vector<1x1xf32>
    %206 = arith.mulf %202, %133 : vector<6x1xf32>
    %cst_90 = arith.constant dense<0.000000e+00> : vector<1xf32>
    %207 = vector.multi_reduction <add>, %206, %cst_90 [0] : vector<6x1xf32> to vector<1xf32>
    %208 = vector.shape_cast %207 : vector<1xf32> to vector<1x1xf32>
    %209 = arith.mulf %202, %149 : vector<6x1xf32>
    %cst_91 = arith.constant dense<0.000000e+00> : vector<1xf32>
    %210 = vector.multi_reduction <add>, %209, %cst_91 [0] : vector<6x1xf32> to vector<1xf32>
    %211 = vector.shape_cast %210 : vector<1xf32> to vector<1x1xf32>
    %212 = vector.extract_strided_slice %21 {offsets = [2, 0], sizes = [1, 1], strides = [1, 1]} : vector<6x1xf32> to vector<1x1xf32>
    %213 = vector.broadcast %212 : vector<1x1xf32> to vector<6x1xf32>
    %214 = arith.mulf %213, %69 : vector<6x1xf32>
    %cst_92 = arith.constant 0.000000e+00 : f32
    %215 = vector.broadcast %cst_92 : f32 to vector<6x1xf32>
    %216 = arith.addf %215, %214 : vector<6x1xf32>
    %217 = vector.extract_strided_slice %37 {offsets = [2, 0], sizes = [1, 1], strides = [1, 1]} : vector<6x1xf32> to vector<1x1xf32>
    %218 = vector.broadcast %217 : vector<1x1xf32> to vector<6x1xf32>
    %219 = arith.mulf %218, %85 : vector<6x1xf32>
    %220 = arith.addf %216, %219 : vector<6x1xf32>
    %221 = vector.extract_strided_slice %53 {offsets = [2, 0], sizes = [1, 1], strides = [1, 1]} : vector<6x1xf32> to vector<1x1xf32>
    %222 = vector.broadcast %221 : vector<1x1xf32> to vector<6x1xf32>
    %223 = arith.mulf %222, %101 : vector<6x1xf32>
    %224 = arith.addf %220, %223 : vector<6x1xf32>
    %cst_93 = arith.constant dense<0xFF800000> : vector<1xf32>
    %225 = vector.multi_reduction <maximumf>, %224, %cst_93 [0] : vector<6x1xf32> to vector<1xf32>
    %226 = vector.shape_cast %225 : vector<1xf32> to vector<1x1xf32>
    %227 = vector.broadcast %226 : vector<1x1xf32> to vector<6x1xf32>
    %228 = arith.subf %224, %227 : vector<6x1xf32>
    %229 = math.exp %228 : vector<6x1xf32>
    %cst_94 = arith.constant dense<0.000000e+00> : vector<1xf32>
    %230 = vector.multi_reduction <add>, %229, %cst_94 [0] : vector<6x1xf32> to vector<1xf32>
    %231 = vector.shape_cast %230 : vector<1xf32> to vector<1x1xf32>
    %232 = vector.broadcast %231 : vector<1x1xf32> to vector<6x1xf32>
    %233 = arith.divf %229, %232 : vector<6x1xf32>
    %234 = arith.mulf %233, %117 : vector<6x1xf32>
    %cst_95 = arith.constant dense<0.000000e+00> : vector<1xf32>
    %235 = vector.multi_reduction <add>, %234, %cst_95 [0] : vector<6x1xf32> to vector<1xf32>
    %236 = vector.shape_cast %235 : vector<1xf32> to vector<1x1xf32>
    %237 = arith.mulf %233, %133 : vector<6x1xf32>
    %cst_96 = arith.constant dense<0.000000e+00> : vector<1xf32>
    %238 = vector.multi_reduction <add>, %237, %cst_96 [0] : vector<6x1xf32> to vector<1xf32>
    %239 = vector.shape_cast %238 : vector<1xf32> to vector<1x1xf32>
    %240 = arith.mulf %233, %149 : vector<6x1xf32>
    %cst_97 = arith.constant dense<0.000000e+00> : vector<1xf32>
    %241 = vector.multi_reduction <add>, %240, %cst_97 [0] : vector<6x1xf32> to vector<1xf32>
    %242 = vector.shape_cast %241 : vector<1xf32> to vector<1x1xf32>
    %243 = vector.extract_strided_slice %21 {offsets = [3, 0], sizes = [1, 1], strides = [1, 1]} : vector<6x1xf32> to vector<1x1xf32>
    %244 = vector.broadcast %243 : vector<1x1xf32> to vector<6x1xf32>
    %245 = arith.mulf %244, %69 : vector<6x1xf32>
    %cst_98 = arith.constant 0.000000e+00 : f32
    %246 = vector.broadcast %cst_98 : f32 to vector<6x1xf32>
    %247 = arith.addf %246, %245 : vector<6x1xf32>
    %248 = vector.extract_strided_slice %37 {offsets = [3, 0], sizes = [1, 1], strides = [1, 1]} : vector<6x1xf32> to vector<1x1xf32>
    %249 = vector.broadcast %248 : vector<1x1xf32> to vector<6x1xf32>
    %250 = arith.mulf %249, %85 : vector<6x1xf32>
    %251 = arith.addf %247, %250 : vector<6x1xf32>
    %252 = vector.extract_strided_slice %53 {offsets = [3, 0], sizes = [1, 1], strides = [1, 1]} : vector<6x1xf32> to vector<1x1xf32>
    %253 = vector.broadcast %252 : vector<1x1xf32> to vector<6x1xf32>
    %254 = arith.mulf %253, %101 : vector<6x1xf32>
    %255 = arith.addf %251, %254 : vector<6x1xf32>
    %cst_99 = arith.constant dense<0xFF800000> : vector<1xf32>
    %256 = vector.multi_reduction <maximumf>, %255, %cst_99 [0] : vector<6x1xf32> to vector<1xf32>
    %257 = vector.shape_cast %256 : vector<1xf32> to vector<1x1xf32>
    %258 = vector.broadcast %257 : vector<1x1xf32> to vector<6x1xf32>
    %259 = arith.subf %255, %258 : vector<6x1xf32>
    %260 = math.exp %259 : vector<6x1xf32>
    %cst_100 = arith.constant dense<0.000000e+00> : vector<1xf32>
    %261 = vector.multi_reduction <add>, %260, %cst_100 [0] : vector<6x1xf32> to vector<1xf32>
    %262 = vector.shape_cast %261 : vector<1xf32> to vector<1x1xf32>
    %263 = vector.broadcast %262 : vector<1x1xf32> to vector<6x1xf32>
    %264 = arith.divf %260, %263 : vector<6x1xf32>
    %265 = arith.mulf %264, %117 : vector<6x1xf32>
    %cst_101 = arith.constant dense<0.000000e+00> : vector<1xf32>
    %266 = vector.multi_reduction <add>, %265, %cst_101 [0] : vector<6x1xf32> to vector<1xf32>
    %267 = vector.shape_cast %266 : vector<1xf32> to vector<1x1xf32>
    %268 = arith.mulf %264, %133 : vector<6x1xf32>
    %cst_102 = arith.constant dense<0.000000e+00> : vector<1xf32>
    %269 = vector.multi_reduction <add>, %268, %cst_102 [0] : vector<6x1xf32> to vector<1xf32>
    %270 = vector.shape_cast %269 : vector<1xf32> to vector<1x1xf32>
    %271 = arith.mulf %264, %149 : vector<6x1xf32>
    %cst_103 = arith.constant dense<0.000000e+00> : vector<1xf32>
    %272 = vector.multi_reduction <add>, %271, %cst_103 [0] : vector<6x1xf32> to vector<1xf32>
    %273 = vector.shape_cast %272 : vector<1xf32> to vector<1x1xf32>
    %274 = vector.extract_strided_slice %21 {offsets = [4, 0], sizes = [1, 1], strides = [1, 1]} : vector<6x1xf32> to vector<1x1xf32>
    %275 = vector.broadcast %274 : vector<1x1xf32> to vector<6x1xf32>
    %276 = arith.mulf %275, %69 : vector<6x1xf32>
    %cst_104 = arith.constant 0.000000e+00 : f32
    %277 = vector.broadcast %cst_104 : f32 to vector<6x1xf32>
    %278 = arith.addf %277, %276 : vector<6x1xf32>
    %279 = vector.extract_strided_slice %37 {offsets = [4, 0], sizes = [1, 1], strides = [1, 1]} : vector<6x1xf32> to vector<1x1xf32>
    %280 = vector.broadcast %279 : vector<1x1xf32> to vector<6x1xf32>
    %281 = arith.mulf %280, %85 : vector<6x1xf32>
    %282 = arith.addf %278, %281 : vector<6x1xf32>
    %283 = vector.extract_strided_slice %53 {offsets = [4, 0], sizes = [1, 1], strides = [1, 1]} : vector<6x1xf32> to vector<1x1xf32>
    %284 = vector.broadcast %283 : vector<1x1xf32> to vector<6x1xf32>
    %285 = arith.mulf %284, %101 : vector<6x1xf32>
    %286 = arith.addf %282, %285 : vector<6x1xf32>
    %cst_105 = arith.constant dense<0xFF800000> : vector<1xf32>
    %287 = vector.multi_reduction <maximumf>, %286, %cst_105 [0] : vector<6x1xf32> to vector<1xf32>
    %288 = vector.shape_cast %287 : vector<1xf32> to vector<1x1xf32>
    %289 = vector.broadcast %288 : vector<1x1xf32> to vector<6x1xf32>
    %290 = arith.subf %286, %289 : vector<6x1xf32>
    %291 = math.exp %290 : vector<6x1xf32>
    %cst_106 = arith.constant dense<0.000000e+00> : vector<1xf32>
    %292 = vector.multi_reduction <add>, %291, %cst_106 [0] : vector<6x1xf32> to vector<1xf32>
    %293 = vector.shape_cast %292 : vector<1xf32> to vector<1x1xf32>
    %294 = vector.broadcast %293 : vector<1x1xf32> to vector<6x1xf32>
    %295 = arith.divf %291, %294 : vector<6x1xf32>
    %296 = arith.mulf %295, %117 : vector<6x1xf32>
    %cst_107 = arith.constant dense<0.000000e+00> : vector<1xf32>
    %297 = vector.multi_reduction <add>, %296, %cst_107 [0] : vector<6x1xf32> to vector<1xf32>
    %298 = vector.shape_cast %297 : vector<1xf32> to vector<1x1xf32>
    %299 = arith.mulf %295, %133 : vector<6x1xf32>
    %cst_108 = arith.constant dense<0.000000e+00> : vector<1xf32>
    %300 = vector.multi_reduction <add>, %299, %cst_108 [0] : vector<6x1xf32> to vector<1xf32>
    %301 = vector.shape_cast %300 : vector<1xf32> to vector<1x1xf32>
    %302 = arith.mulf %295, %149 : vector<6x1xf32>
    %cst_109 = arith.constant dense<0.000000e+00> : vector<1xf32>
    %303 = vector.multi_reduction <add>, %302, %cst_109 [0] : vector<6x1xf32> to vector<1xf32>
    %304 = vector.shape_cast %303 : vector<1xf32> to vector<1x1xf32>
    %305 = vector.extract_strided_slice %21 {offsets = [5, 0], sizes = [1, 1], strides = [1, 1]} : vector<6x1xf32> to vector<1x1xf32>
    %306 = vector.broadcast %305 : vector<1x1xf32> to vector<6x1xf32>
    %307 = arith.mulf %306, %69 : vector<6x1xf32>
    %cst_110 = arith.constant 0.000000e+00 : f32
    %308 = vector.broadcast %cst_110 : f32 to vector<6x1xf32>
    %309 = arith.addf %308, %307 : vector<6x1xf32>
    %310 = vector.extract_strided_slice %37 {offsets = [5, 0], sizes = [1, 1], strides = [1, 1]} : vector<6x1xf32> to vector<1x1xf32>
    %311 = vector.broadcast %310 : vector<1x1xf32> to vector<6x1xf32>
    %312 = arith.mulf %311, %85 : vector<6x1xf32>
    %313 = arith.addf %309, %312 : vector<6x1xf32>
    %314 = vector.extract_strided_slice %53 {offsets = [5, 0], sizes = [1, 1], strides = [1, 1]} : vector<6x1xf32> to vector<1x1xf32>
    %315 = vector.broadcast %314 : vector<1x1xf32> to vector<6x1xf32>
    %316 = arith.mulf %315, %101 : vector<6x1xf32>
    %317 = arith.addf %313, %316 : vector<6x1xf32>
    %cst_111 = arith.constant dense<0xFF800000> : vector<1xf32>
    %318 = vector.multi_reduction <maximumf>, %317, %cst_111 [0] : vector<6x1xf32> to vector<1xf32>
    %319 = vector.shape_cast %318 : vector<1xf32> to vector<1x1xf32>
    %320 = vector.broadcast %319 : vector<1x1xf32> to vector<6x1xf32>
    %321 = arith.subf %317, %320 : vector<6x1xf32>
    %322 = math.exp %321 : vector<6x1xf32>
    %cst_112 = arith.constant dense<0.000000e+00> : vector<1xf32>
    %323 = vector.multi_reduction <add>, %322, %cst_112 [0] : vector<6x1xf32> to vector<1xf32>
    %324 = vector.shape_cast %323 : vector<1xf32> to vector<1x1xf32>
    %325 = vector.broadcast %324 : vector<1x1xf32> to vector<6x1xf32>
    %326 = arith.divf %322, %325 : vector<6x1xf32>
    %327 = arith.mulf %326, %117 : vector<6x1xf32>
    %cst_113 = arith.constant dense<0.000000e+00> : vector<1xf32>
    %328 = vector.multi_reduction <add>, %327, %cst_113 [0] : vector<6x1xf32> to vector<1xf32>
    %329 = vector.shape_cast %328 : vector<1xf32> to vector<1x1xf32>
    %330 = arith.mulf %326, %133 : vector<6x1xf32>
    %cst_114 = arith.constant dense<0.000000e+00> : vector<1xf32>
    %331 = vector.multi_reduction <add>, %330, %cst_114 [0] : vector<6x1xf32> to vector<1xf32>
    %332 = vector.shape_cast %331 : vector<1xf32> to vector<1x1xf32>
    %333 = arith.mulf %326, %149 : vector<6x1xf32>
    %cst_115 = arith.constant dense<0.000000e+00> : vector<1xf32>
    %334 = vector.multi_reduction <add>, %333, %cst_115 [0] : vector<6x1xf32> to vector<1xf32>
    %335 = vector.shape_cast %334 : vector<1xf32> to vector<1x1xf32>
    %336 = tpu.concatenate %174, %205, %236, %267, %298, %329 in 0 : vector<1x1xf32>, vector<1x1xf32>, vector<1x1xf32>, vector<1x1xf32>, vector<1x1xf32>, vector<1x1xf32> -> vector<6x1xf32>
    %c0_116 = arith.constant 0 : index
    %c0_117 = arith.constant 0 : index
    %c0_118 = arith.constant 0 : index
    %337 = vector.load %arg3[%c0_116, %c0_117, %c0_118] : memref<3x6x1xf32, #tpu.memory_space<vmem>>, vector<1x6x1xf32>
    %338 = vector.shape_cast %337 : vector<1x6x1xf32> to vector<6x1xf32>
    %339 = vector.shape_cast %336 : vector<6x1xf32> to vector<1x6x1xf32>
    tpu.vector_store %arg3[%c0_116, %c0_117, %c0_118], %339 {strides = array<i32>} : memref<3x6x1xf32, #tpu.memory_space<vmem>>, vector<1x6x1xf32>,
    %340 = tpu.concatenate %177, %208, %239, %270, %301, %332 in 0 : vector<1x1xf32>, vector<1x1xf32>, vector<1x1xf32>, vector<1x1xf32>, vector<1x1xf32>, vector<1x1xf32> -> vector<6x1xf32>
    %c1_119 = arith.constant 1 : index
    %c0_120 = arith.constant 0 : index
    %c0_121 = arith.constant 0 : index
    %341 = vector.load %arg3[%c1_119, %c0_120, %c0_121] : memref<3x6x1xf32, #tpu.memory_space<vmem>>, vector<1x6x1xf32>
    %342 = vector.shape_cast %341 : vector<1x6x1xf32> to vector<6x1xf32>
    %343 = vector.shape_cast %340 : vector<6x1xf32> to vector<1x6x1xf32>
    tpu.vector_store %arg3[%c1_119, %c0_120, %c0_121], %343 {strides = array<i32>} : memref<3x6x1xf32, #tpu.memory_space<vmem>>, vector<1x6x1xf32>,
    %344 = tpu.concatenate %180, %211, %242, %273, %304, %335 in 0 : vector<1x1xf32>, vector<1x1xf32>, vector<1x1xf32>, vector<1x1xf32>, vector<1x1xf32>, vector<1x1xf32> -> vector<6x1xf32>
    %c2_122 = arith.constant 2 : index
    %c0_123 = arith.constant 0 : index
    %c0_124 = arith.constant 0 : index
    %345 = vector.load %arg3[%c2_122, %c0_123, %c0_124] : memref<3x6x1xf32, #tpu.memory_space<vmem>>, vector<1x6x1xf32>
    %346 = vector.shape_cast %345 : vector<1x6x1xf32> to vector<6x1xf32>
    %347 = vector.shape_cast %344 : vector<6x1xf32> to vector<1x6x1xf32>
    tpu.vector_store %arg3[%c2_122, %c0_123, %c0_124], %347 {strides = array<i32>} : memref<3x6x1xf32, #tpu.memory_space<vmem>>, vector<1x6x1xf32>,
    return
  }
  func.func @transform_0(%arg0: i32) -> (i32, i32, i32) {
    %c0_i32 = arith.constant 0 : i32
    %c0_i32_0 = arith.constant 0 : i32
    %c0_i32_1 = arith.constant 0 : i32
    return %c0_i32, %c0_i32_0, %arg0 : i32, i32, i32
  }
  func.func @transform_1(%arg0: i32) -> (i32, i32) {
    %c0_i32 = arith.constant 0 : i32
    %c0_i32_0 = arith.constant 0 : i32
    %c0_i32_1 = arith.constant 0 : i32
    return %c0_i32, %c0_i32_0 : i32, i32
  }
  func.func @transform_2(%arg0: i32) -> (i32, i32, i32) {
    %c0_i32 = arith.constant 0 : i32
    %c0_i32_0 = arith.constant 0 : i32
    %c0_i32_1 = arith.constant 0 : i32
    return %c0_i32, %c0_i32_0, %arg0 : i32, i32, i32
  }
}

</mosaic_0001>

<llo_original>
// kernel: tpu_custom_call.1
$region0: #{tpu_custom_call.1}
  #allocation0 [shape = 'u32[]', space=smem, size = 0x4, offset = 0x4, fixed_abs, tag = 'smem constant byte address 0x4 - core index']
  #allocation1 [shape = 'u32[144,128]{1,0:T(1,128)}', space=vmem, size = 0x12000, scoped, tag = 'internal scratch']
  %s0 = inlined_call_operand.vmem [shape: f32[3,6,1], index: 0, kind: input, shape index: {}]
  %s1 = inlined_call_operand.vmem [shape: f32[4,9], index: 1, kind: input, shape index: {}]
  %s2 = inlined_call_operand.vmem [shape: f32[3,6,1], index: 2, kind: output, shape index: {}]
  %s3 = sld [smem:[#allocation0]]
  $region22: #{tpu_custom_call.1} parent=0
    _
  %s5 = ssub.s32 1, %s3
  %s6 = scalar_select 0, %s5, %s3
  $region1: #{tpu_custom_call.1} parent=0
    #allocation2 [shape = 'u8[2048]{0}', space=smem, size = 0x800, scoped, tag = 'input window, operand 1, single buffered']
    #allocation3 [shape = 's32[1]{0}', space=sflag, size = 0x4, scoped, tag = 'scoped memory for tpu_custom_call.1']
    %7 = vsyncpa [#allocation3], 0
    // Predicated region
    $region2: #{tpu_custom_call.1} parent=1 // pred_check
      _
    $region3: #{tpu_custom_call.1} parent=1 // pred_check_branch
      %9 = sbr.rel (0) target = $region5
    $region4: #{tpu_custom_call.1} parent=1 // pred_region
      _
    $region5: #{tpu_custom_call.1} parent=1 // pred_fallthru
      _
    // Predicated region
    $region6: #{tpu_custom_call.1} parent=1 // pred_check
      _
    $region7: #{tpu_custom_call.1} parent=1 // pred_check_branch
      %11 = sbr.rel (0) target = $region9
    $region8: #{tpu_custom_call.1} parent=1 // pred_region
      %s13 = ssub.s32 64, 64
      %14 = vsyncadd [#allocation3], %s13
      %s16 = sshll.u32 %s1, 4
      %s17 = int_to_ptr.vmem [resolvable:$true] %s16
      %19 = dma.vmem_to_smem %s17, 64, [#allocation2], [#allocation3]
    $region9: #{tpu_custom_call.1} parent=1 // pred_fallthru
      _
    // Predicated region
    $region10: #{tpu_custom_call.1} parent=1 // pred_check
      _
    $region11: #{tpu_custom_call.1} parent=1 // pred_check_branch
      %21 = sbr.rel (0) target = $region13
    $region12: #{tpu_custom_call.1} parent=1 // pred_region
      %22 = dma.done [#allocation3], 64
    $region13: #{tpu_custom_call.1} parent=1 // pred_fallthru
      _
    %23 = sfence
    %v24 = vld [vmem:[%s0] sm:$0x3f]
    %s25 = scalar_lea.vmem %s0, 8
    %v26 = vld [vmem:[%s25] sm:$0x3f]
    %s27 = scalar_lea.vmem %s0, 16
    %v28 = vld [vmem:[%s27] sm:$0x3f]
    %s29 = sld [smem:[#allocation2]]
    %v30 = vstv %s29
    %v31 = vmul.f32 %v24, %v30
    %v32 = vadd.f32 %v31, 0.0
    %s33 = sld [smem:[#allocation2 + $0x80]]
    %v34 = vstv %s33
    %v35 = vmul.f32 %v26, %v34
    %v36 = vadd.f32 %v32, %v35
    %s37 = sld [smem:[#allocation2 + $0x100]]
    %v38 = vstv %s37
    %v39 = vmul.f32 %v28, %v38
    %v40 = vadd.f32 %v36, %v39
    %s41 = sld [smem:[#allocation2 + $0x180]]
    %v42 = vstv %s41
    %v43 = vadd.f32 %v40, %v42
    %s44 = sld [smem:[#allocation2 + $0x1]]
    %v45 = vstv %s44
    %v46 = vmul.f32 %v24, %v45
    %v47 = vadd.f32 %v46, 0.0
    %s48 = sld [smem:[#allocation2 + $0x81]]
    %v49 = vstv %s48
    %v50 = vmul.f32 %v26, %v49
    %v51 = vadd.f32 %v47, %v50
    %s52 = sld [smem:[#allocation2 + $0x101]]
    %v53 = vstv %s52
    %v54 = vmul.f32 %v28, %v53
    %v55 = vadd.f32 %v51, %v54
    %s56 = sld [smem:[#allocation2 + $0x181]]
    %v57 = vstv %s56
    %v58 = vadd.f32 %v55, %v57
    %s59 = sld [smem:[#allocation2 + $0x2]]
    %v60 = vstv %s59
    %v61 = vmul.f32 %v24, %v60
    %v62 = vadd.f32 %v61, 0.0
    %s63 = sld [smem:[#allocation2 + $0x82]]
    %v64 = vstv %s63
    %v65 = vmul.f32 %v26, %v64
    %v66 = vadd.f32 %v62, %v65
    %s67 = sld [smem:[#allocation2 + $0x102]]
    %v68 = vstv %s67
    %v69 = vmul.f32 %v28, %v68
    %v70 = vadd.f32 %v66, %v69
    %s71 = sld [smem:[#allocation2 + $0x182]]
    %v72 = vstv %s71
    %v73 = vadd.f32 %v70, %v72
    %s74 = sld [smem:[#allocation2 + $0x3]]
    %v75 = vstv %s74
    %v76 = vmul.f32 %v24, %v75
    %v77 = vadd.f32 %v76, 0.0
    %s78 = sld [smem:[#allocation2 + $0x83]]
    %v79 = vstv %s78
    %v80 = vmul.f32 %v26, %v79
    %v81 = vadd.f32 %v77, %v80
    %s82 = sld [smem:[#allocation2 + $0x103]]
    %v83 = vstv %s82
    %v84 = vmul.f32 %v28, %v83
    %v85 = vadd.f32 %v81, %v84
    %s86 = sld [smem:[#allocation2 + $0x183]]
    %v87 = vstv %s86
    %v88 = vadd.f32 %v85, %v87
    %s89 = sld [smem:[#allocation2 + $0x4]]
    %v90 = vstv %s89
    %v91 = vmul.f32 %v24, %v90
    %v92 = vadd.f32 %v91, 0.0
    %s93 = sld [smem:[#allocation2 + $0x84]]
    %v94 = vstv %s93
    %v95 = vmul.f32 %v26, %v94
    %v96 = vadd.f32 %v92, %v95
    %s97 = sld [smem:[#allocation2 + $0x104]]
    %v98 = vstv %s97
    %v99 = vmul.f32 %v28, %v98
    %v100 = vadd.f32 %v96, %v99
    %s101 = sld [smem:[#allocation2 + $0x184]]
    %v102 = vstv %s101
    %v103 = vadd.f32 %v100, %v102
    %s104 = sld [smem:[#allocation2 + $0x5]]
    %v105 = vstv %s104
    %v106 = vmul.f32 %v24, %v105
    %v107 = vadd.f32 %v106, 0.0
    %s108 = sld [smem:[#allocation2 + $0x85]]
    %v109 = vstv %s108
    %v110 = vmul.f32 %v26, %v109
    %v111 = vadd.f32 %v107, %v110
    %s112 = sld [smem:[#allocation2 + $0x105]]
    %v113 = vstv %s112
    %v114 = vmul.f32 %v28, %v113
    %v115 = vadd.f32 %v111, %v114
    %s116 = sld [smem:[#allocation2 + $0x185]]
    %v117 = vstv %s116
    %v118 = vadd.f32 %v115, %v117
    %s119 = sld [smem:[#allocation2 + $0x6]]
    %v120 = vstv %s119
    %v121 = vmul.f32 %v24, %v120
    %v122 = vadd.f32 %v121, 0.0
    %s123 = sld [smem:[#allocation2 + $0x86]]
    %v124 = vstv %s123
    %v125 = vmul.f32 %v26, %v124
    %v126 = vadd.f32 %v122, %v125
    %s127 = sld [smem:[#allocation2 + $0x106]]
    %v128 = vstv %s127
    %v129 = vmul.f32 %v28, %v128
    %v130 = vadd.f32 %v126, %v129
    %s131 = sld [smem:[#allocation2 + $0x186]]
    %v132 = vstv %s131
    %v133 = vadd.f32 %v130, %v132
    %s134 = sld [smem:[#allocation2 + $0x7]]
    %v135 = vstv %s134
    %v136 = vmul.f32 %v24, %v135
    %v137 = vadd.f32 %v136, 0.0
    %s138 = sld [smem:[#allocation2 + $0x87]]
    %v139 = vstv %s138
    %v140 = vmul.f32 %v26, %v139
    %v141 = vadd.f32 %v137, %v140
    %s142 = sld [smem:[#allocation2 + $0x107]]
    %v143 = vstv %s142
    %v144 = vmul.f32 %v28, %v143
    %v145 = vadd.f32 %v141, %v144
    %s146 = sld [smem:[#allocation2 + $0x187]]
    %v147 = vstv %s146
    %v148 = vadd.f32 %v145, %v147
    %s149 = sld [smem:[#allocation2 + $0x8]]
    %v150 = vstv %s149
    %v151 = vmul.f32 %v24, %v150
    %v152 = vadd.f32 %v151, 0.0
    %s153 = sld [smem:[#allocation2 + $0x88]]
    %v154 = vstv %s153
    %v155 = vmul.f32 %v26, %v154
    %v156 = vadd.f32 %v152, %v155
    %s157 = sld [smem:[#allocation2 + $0x108]]
    %v158 = vstv %s157
    %v159 = vmul.f32 %v28, %v158
    %v160 = vadd.f32 %v156, %v159
    %s161 = sld [smem:[#allocation2 + $0x188]]
    %v162 = vstv %s161
    %v163 = vadd.f32 %v160, %v162
    %v164 = vlaneseq
    %v165 = vshrl.u32 %v164, 7
    %v166 = vsub.s32 0, %v165
    %v167 = vrot.slane %v43, %v166
    %v168 = vmul.f32 %v167, %v88
    %v169 = vadd.f32 %v168, 0.0
    %v170 = vlaneseq
    %v171 = vshrl.u32 %v170, 7
    %v172 = vsub.s32 0, %v171
    %v173 = vrot.slane %v58, %v172
    %v174 = vmul.f32 %v173, %v103
    %v175 = vadd.f32 %v169, %v174
    %v176 = vlaneseq
    %v177 = vshrl.u32 %v176, 7
    %v178 = vsub.s32 0, %v177
    %v179 = vrot.slane %v73, %v178
    %v180 = vmul.f32 %v179, %v118
    %v181 = vadd.f32 %v175, %v180
    %vm182 = vcmask 5120
    %v183 = vsel %vm182, %v181, -inf
    %v184 = vrot.slane %v183, 4
    %v185 = vmax.f32 %v183, %v184
    %v186 = vrot.slane %v185, 2
    %v187 = vmax.f32 %v185, %v186
    %v188 = vrot.slane %v187, 1
    %v189 = vmax.f32 %v187, %v188
    %v190 = vsub.f32 %v181, %v189
    %v191 = vmul.f32 %v190, 1.442695
    %v192 = vpow.pop %v191
    %v193 = vsel %vm182, %v192, 0.0
    %v194 = vrot.slane %v193, 4
    %v195 = vadd.f32 %v193, %v194
    %v196 = vrot.slane %v195, 2
    %v197 = vadd.f32 %v195, %v196
    %v198 = vrot.slane %v197, 1
    %v199 = vadd.f32 %v197, %v198
    %v200 = vrcp.pop %v199
    %v201 = vmul.f32 %v192, %v200
    %v202 = vmul.f32 %v201, %v133
    %v203 = vsel %vm182, %v202, 0.0
    %v204 = vrot.slane %v203, 4
    %v205 = vadd.f32 %v203, %v204
    %v206 = vrot.slane %v205, 2
    %v207 = vadd.f32 %v205, %v206
    %v208 = vrot.slane %v207, 1
    %v209 = vadd.f32 %v207, %v208
    %v210 = vmul.f32 %v201, %v148
    %v211 = vsel %vm182, %v210, 0.0
    %v212 = vrot.slane %v211, 4
    %v213 = vadd.f32 %v211, %v212
    %v214 = vrot.slane %v213, 2
    %v215 = vadd.f32 %v213, %v214
    %v216 = vrot.slane %v215, 1
    %v217 = vadd.f32 %v215, %v216
    %v218 = vmul.f32 %v201, %v163
    %v219 = vsel %vm182, %v218, 0.0
    %v220 = vrot.slane %v219, 4
    %v221 = vadd.f32 %v219, %v220
    %v222 = vrot.slane %v221, 2
    %v223 = vadd.f32 %v221, %v222
    %v224 = vrot.slane %v223, 1
    %v225 = vadd.f32 %v223, %v224
    %v226 = vlaneseq
    %v227 = vshrl.u32 %v226, 7
    %v228 = vsub.s32 1, %v227
    %v229 = vrot.slane %v43, %v228
    %v230 = vmul.f32 %v229, %v88
    %v231 = vadd.f32 %v230, 0.0
    %v232 = vlaneseq
    %v233 = vshrl.u32 %v232, 7
    %v234 = vsub.s32 1, %v233
    %v235 = vrot.slane %v58, %v234
    %v236 = vmul.f32 %v235, %v103
    %v237 = vadd.f32 %v231, %v236
    %v238 = vlaneseq
    %v239 = vshrl.u32 %v238, 7
    %v240 = vsub.s32 1, %v239
    %v241 = vrot.slane %v73, %v240
    %v242 = vmul.f32 %v241, %v118
    %v243 = vadd.f32 %v237, %v242
    %v244 = vsel %vm182, %v243, -inf
    %v245 = vrot.slane %v244, 4
    %v246 = vmax.f32 %v244, %v245
    %v247 = vrot.slane %v246, 2
    %v248 = vmax.f32 %v246, %v247
    %v249 = vrot.slane %v248, 1
    %v250 = vmax.f32 %v248, %v249
    %v251 = vsub.f32 %v243, %v250
    %v252 = vmul.f32 %v251, 1.442695
    %v253 = vpow.pop %v252
    %v254 = vsel %vm182, %v253, 0.0
    %v255 = vrot.slane %v254, 4
    %v256 = vadd.f32 %v254, %v255
    %v257 = vrot.slane %v256, 2
    %v258 = vadd.f32 %v256, %v257
    %v259 = vrot.slane %v258, 1
    %v260 = vadd.f32 %v258, %v259
    %v261 = vrcp.pop %v260
    %v262 = vmul.f32 %v253, %v261
    %v263 = vmul.f32 %v262, %v133
    %v264 = vsel %vm182, %v263, 0.0
    %v265 = vrot.slane %v264, 4
    %v266 = vadd.f32 %v264, %v265
    %v267 = vrot.slane %v266, 2
    %v268 = vadd.f32 %v266, %v267
    %v269 = vrot.slane %v268, 1
    %v270 = vadd.f32 %v268, %v269
    %v271 = vmul.f32 %v262, %v148
    %v272 = vsel %vm182, %v271, 0.0
    %v273 = vrot.slane %v272, 4
    %v274 = vadd.f32 %v272, %v273
    %v275 = vrot.slane %v274, 2
    %v276 = vadd.f32 %v274, %v275
    %v277 = vrot.slane %v276, 1
    %v278 = vadd.f32 %v276, %v277
    %v279 = vmul.f32 %v262, %v163
    %v280 = vsel %vm182, %v279, 0.0
    %v281 = vrot.slane %v280, 4
    %v282 = vadd.f32 %v280, %v281
    %v283 = vrot.slane %v282, 2
    %v284 = vadd.f32 %v282, %v283
    %v285 = vrot.slane %v284, 1
    %v286 = vadd.f32 %v284, %v285
    %v287 = vlaneseq
    %v288 = vshrl.u32 %v287, 7
    %v289 = vsub.s32 2, %v288
    %v290 = vrot.slane %v43, %v289
    %v291 = vmul.f32 %v290, %v88
    %v292 = vadd.f32 %v291, 0.0
    %v293 = vlaneseq
    %v294 = vshrl.u32 %v293, 7
    %v295 = vsub.s32 2, %v294
    %v296 = vrot.slane %v58, %v295
    %v297 = vmul.f32 %v296, %v103
    %v298 = vadd.f32 %v292, %v297
    %v299 = vlaneseq
    %v300 = vshrl.u32 %v299, 7
    %v301 = vsub.s32 2, %v300
    %v302 = vrot.slane %v73, %v301
    %v303 = vmul.f32 %v302, %v118
    %v304 = vadd.f32 %v298, %v303
    %v305 = vsel %vm182, %v304, -inf
    %v306 = vrot.slane %v305, 4
    %v307 = vmax.f32 %v305, %v306
    %v308 = vrot.slane %v307, 2
    %v309 = vmax.f32 %v307, %v308
    %v310 = vrot.slane %v309, 1
    %v311 = vmax.f32 %v309, %v310
    %v312 = vsub.f32 %v304, %v311
    %v313 = vmul.f32 %v312, 1.442695
    %v314 = vpow.pop %v313
    %v315 = vsel %vm182, %v314, 0.0
    %v316 = vrot.slane %v315, 4
    %v317 = vadd.f32 %v315, %v316
    %v318 = vrot.slane %v317, 2
    %v319 = vadd.f32 %v317, %v318
    %v320 = vrot.slane %v319, 1
    %v321 = vadd.f32 %v319, %v320
    %v322 = vrcp.pop %v321
    %v323 = vmul.f32 %v314, %v322
    %v324 = vmul.f32 %v323, %v133
    %v325 = vsel %vm182, %v324, 0.0
    %v326 = vrot.slane %v325, 4
    %v327 = vadd.f32 %v325, %v326
    %v328 = vrot.slane %v327, 2
    %v329 = vadd.f32 %v327, %v328
    %v330 = vrot.slane %v329, 1
    %v331 = vadd.f32 %v329, %v330
    %v332 = vmul.f32 %v323, %v148
    %v333 = vsel %vm182, %v332, 0.0
    %v334 = vrot.slane %v333, 4
    %v335 = vadd.f32 %v333, %v334
    %v336 = vrot.slane %v335, 2
    %v337 = vadd.f32 %v335, %v336
    %v338 = vrot.slane %v337, 1
    %v339 = vadd.f32 %v337, %v338
    %v340 = vmul.f32 %v323, %v163
    %v341 = vsel %vm182, %v340, 0.0
    %v342 = vrot.slane %v341, 4
    %v343 = vadd.f32 %v341, %v342
    %v344 = vrot.slane %v343, 2
    %v345 = vadd.f32 %v343, %v344
    %v346 = vrot.slane %v345, 1
    %v347 = vadd.f32 %v345, %v346
    %v348 = vlaneseq
    %v349 = vshrl.u32 %v348, 7
    %v350 = vsub.s32 3, %v349
    %v351 = vrot.slane %v43, %v350
    %v352 = vmul.f32 %v351, %v88
    %v353 = vadd.f32 %v352, 0.0
    %v354 = vlaneseq
    %v355 = vshrl.u32 %v354, 7
    %v356 = vsub.s32 3, %v355
    %v357 = vrot.slane %v58, %v356
    %v358 = vmul.f32 %v357, %v103
    %v359 = vadd.f32 %v353, %v358
    %v360 = vlaneseq
    %v361 = vshrl.u32 %v360, 7
    %v362 = vsub.s32 3, %v361
    %v363 = vrot.slane %v73, %v362
    %v364 = vmul.f32 %v363, %v118
    %v365 = vadd.f32 %v359, %v364
    %v366 = vsel %vm182, %v365, -inf
    %v367 = vrot.slane %v366, 4
    %v368 = vmax.f32 %v366, %v367
    %v369 = vrot.slane %v368, 2
    %v370 = vmax.f32 %v368, %v369
    %v371 = vrot.slane %v370, 1
    %v372 = vmax.f32 %v370, %v371
    %v373 = vsub.f32 %v365, %v372
    %v374 = vmul.f32 %v373, 1.442695
    %v375 = vpow.pop %v374
    %v376 = vsel %vm182, %v375, 0.0
    %v377 = vrot.slane %v376, 4
    %v378 = vadd.f32 %v376, %v377
    %v379 = vrot.slane %v378, 2
    %v380 = vadd.f32 %v378, %v379
    %v381 = vrot.slane %v380, 1
    %v382 = vadd.f32 %v380, %v381
    %v383 = vrcp.pop %v382
    %v384 = vmul.f32 %v375, %v383
    %v385 = vmul.f32 %v384, %v133
    %v386 = vsel %vm182, %v385, 0.0
    %v387 = vrot.slane %v386, 4
    %v388 = vadd.f32 %v386, %v387
    %v389 = vrot.slane %v388, 2
    %v390 = vadd.f32 %v388, %v389
    %v391 = vrot.slane %v390, 1
    %v392 = vadd.f32 %v390, %v391
    %v393 = vmul.f32 %v384, %v148
    %v394 = vsel %vm182, %v393, 0.0
    %v395 = vrot.slane %v394, 4
    %v396 = vadd.f32 %v394, %v395
    %v397 = vrot.slane %v396, 2
    %v398 = vadd.f32 %v396, %v397
    %v399 = vrot.slane %v398, 1
    %v400 = vadd.f32 %v398, %v399
    %v401 = vmul.f32 %v384, %v163
    %v402 = vsel %vm182, %v401, 0.0
    %v403 = vrot.slane %v402, 4
    %v404 = vadd.f32 %v402, %v403
    %v405 = vrot.slane %v404, 2
    %v406 = vadd.f32 %v404, %v405
    %v407 = vrot.slane %v406, 1
    %v408 = vadd.f32 %v406, %v407
    %v409 = vlaneseq
    %v410 = vshrl.u32 %v409, 7
    %v411 = vsub.s32 4, %v410
    %v412 = vrot.slane %v43, %v411
    %v413 = vmul.f32 %v412, %v88
    %v414 = vadd.f32 %v413, 0.0
    %v415 = vlaneseq
    %v416 = vshrl.u32 %v415, 7
    %v417 = vsub.s32 4, %v416
    %v418 = vrot.slane %v58, %v417
    %v419 = vmul.f32 %v418, %v103
    %v420 = vadd.f32 %v414, %v419
    %v421 = vlaneseq
    %v422 = vshrl.u32 %v421, 7
    %v423 = vsub.s32 4, %v422
    %v424 = vrot.slane %v73, %v423
    %v425 = vmul.f32 %v424, %v118
    %v426 = vadd.f32 %v420, %v425
    %v427 = vsel %vm182, %v426, -inf
    %v428 = vrot.slane %v427, 4
    %v429 = vmax.f32 %v427, %v428
    %v430 = vrot.slane %v429, 2
    %v431 = vmax.f32 %v429, %v430
    %v432 = vrot.slane %v431, 1
    %v433 = vmax.f32 %v431, %v432
    %v434 = vsub.f32 %v426, %v433
    %v435 = vmul.f32 %v434, 1.442695
    %v436 = vpow.pop %v435
    %v437 = vsel %vm182, %v436, 0.0
    %v438 = vrot.slane %v437, 4
    %v439 = vadd.f32 %v437, %v438
    %v440 = vrot.slane %v439, 2
    %v441 = vadd.f32 %v439, %v440
    %v442 = vrot.slane %v441, 1
    %v443 = vadd.f32 %v441, %v442
    %v444 = vrcp.pop %v443
    %v445 = vmul.f32 %v436, %v444
    %v446 = vmul.f32 %v445, %v133
    %v447 = vsel %vm182, %v446, 0.0
    %v448 = vrot.slane %v447, 4
    %v449 = vadd.f32 %v447, %v448
    %v450 = vrot.slane %v449, 2
    %v451 = vadd.f32 %v449, %v450
    %v452 = vrot.slane %v451, 1
    %v453 = vadd.f32 %v451, %v452
    %v454 = vmul.f32 %v445, %v148
    %v455 = vsel %vm182, %v454, 0.0
    %v456 = vrot.slane %v455, 4
    %v457 = vadd.f32 %v455, %v456
    %v458 = vrot.slane %v457, 2
    %v459 = vadd.f32 %v457, %v458
    %v460 = vrot.slane %v459, 1
    %v461 = vadd.f32 %v459, %v460
    %v462 = vmul.f32 %v445, %v163
    %v463 = vsel %vm182, %v462, 0.0
    %v464 = vrot.slane %v463, 4
    %v465 = vadd.f32 %v463, %v464
    %v466 = vrot.slane %v465, 2
    %v467 = vadd.f32 %v465, %v466
    %v468 = vrot.slane %v467, 1
    %v469 = vadd.f32 %v467, %v468
    %v470 = vlaneseq
    %v471 = vshrl.u32 %v470, 7
    %v472 = vsub.s32 5, %v471
    %v473 = vrot.slane %v43, %v472
    %v474 = vmul.f32 %v473, %v88
    %v475 = vadd.f32 %v474, 0.0
    %v476 = vlaneseq
    %v477 = vshrl.u32 %v476, 7
    %v478 = vsub.s32 5, %v477
    %v479 = vrot.slane %v58, %v478
    %v480 = vmul.f32 %v479, %v103
    %v481 = vadd.f32 %v475, %v480
    %v482 = vlaneseq
    %v483 = vshrl.u32 %v482, 7
    %v484 = vsub.s32 5, %v483
    %v485 = vrot.slane %v73, %v484
    %v486 = vmul.f32 %v485, %v118
    %v487 = vadd.f32 %v481, %v486
    %v488 = vsel %vm182, %v487, -inf
    %v489 = vrot.slane %v488, 4
    %v490 = vmax.f32 %v488, %v489
    %v491 = vrot.slane %v490, 2
    %v492 = vmax.f32 %v490, %v491
    %v493 = vrot.slane %v492, 1
    %v494 = vmax.f32 %v492, %v493
    %v495 = vsub.f32 %v487, %v494
    %v496 = vmul.f32 %v495, 1.442695
    %v497 = vpow.pop %v496
    %v498 = vsel %vm182, %v497, 0.0
    %v499 = vrot.slane %v498, 4
    %v500 = vadd.f32 %v498, %v499
    %v501 = vrot.slane %v500, 2
    %v502 = vadd.f32 %v500, %v501
    %v503 = vrot.slane %v502, 1
    %v504 = vadd.f32 %v502, %v503
    %v505 = vrcp.pop %v504
    %v506 = vmul.f32 %v497, %v505
    %v507 = vmul.f32 %v506, %v133
    %v508 = vsel %vm182, %v507, 0.0
    %v509 = vrot.slane %v508, 4
    %v510 = vadd.f32 %v508, %v509
    %v511 = vrot.slane %v510, 2
    %v512 = vadd.f32 %v510, %v511
    %v513 = vrot.slane %v512, 1
    %v514 = vadd.f32 %v512, %v513
    %v515 = vmul.f32 %v506, %v148
    %v516 = vsel %vm182, %v515, 0.0
    %v517 = vrot.slane %v516, 4
    %v518 = vadd.f32 %v516, %v517
    %v519 = vrot.slane %v518, 2
    %v520 = vadd.f32 %v518, %v519
    %v521 = vrot.slane %v520, 1
    %v522 = vadd.f32 %v520, %v521
    %v523 = vmul.f32 %v506, %v163
    %v524 = vsel %vm182, %v523, 0.0
    %v525 = vrot.slane %v524, 4
    %v526 = vadd.f32 %v524, %v525
    %v527 = vrot.slane %v526, 2
    %v528 = vadd.f32 %v526, %v527
    %v529 = vrot.slane %v528, 1
    %v530 = vadd.f32 %v528, %v529
    %vm531 = vcmask 1040384
    %v532 = vsel %vm531, %v209, %v270
    %vm533 = vcmask 1041408
    %v534 = vsel %vm533, %v532, %v331
    %vm535 = vcmask 1042432
    %v536 = vsel %vm535, %v534, %v392
    %vm537 = vcmask 1043456
    %v538 = vsel %vm537, %v536, %v453
    %vm539 = vcmask 1044480
    %v540 = vsel %vm539, %v538, %v514
    %541 = vst.msk [vmem:[%s2] sm:$0x3f] %vm182, %v540
    %v542 = vsel %vm531, %v217, %v278
    %v543 = vsel %vm533, %v542, %v339
    %v544 = vsel %vm535, %v543, %v400
    %v545 = vsel %vm537, %v544, %v461
    %v546 = vsel %vm539, %v545, %v522
    %s547 = scalar_lea.vmem %s2, 8
    %548 = vst.msk [vmem:[%s547] sm:$0x3f] %vm182, %v546
    %v549 = vsel %vm531, %v225, %v286
    %v550 = vsel %vm533, %v549, %v347
    %v551 = vsel %vm535, %v550, %v408
    %v552 = vsel %vm537, %v551, %v469
    %v553 = vsel %vm539, %v552, %v530
    %s554 = scalar_lea.vmem %s2, 16
    %555 = vst.msk [vmem:[%s554] sm:$0x3f] %vm182, %v553
    // Predicated region
    $region14: #{tpu_custom_call.1} parent=1 // pred_check
      _
    $region15: #{tpu_custom_call.1} parent=1 // pred_check_branch
      %557 = sbr.rel (0) target = $region17
    $region16: #{tpu_custom_call.1} parent=1 // pred_region
      _
    $region17: #{tpu_custom_call.1} parent=1 // pred_fallthru
      _
    // Predicated region
    $region18: #{tpu_custom_call.1} parent=1 // pred_check
      _
    $region19: #{tpu_custom_call.1} parent=1 // pred_check_branch
      %559 = sbr.rel (0) target = $region21
    $region20: #{tpu_custom_call.1} parent=1 // pred_region
      _
    $region21: #{tpu_custom_call.1} parent=1 // pred_fallthru
      _
    %560 = vsyncpa [#allocation3], 1

</llo_original>
